<compile_context>
chip_gen: v7x
topology: tpu7x:2x2x1
jax: 0.10.0
libtpu: 0.0.40
codegen_flags: <defaults>
</compile_context>

<pallas_src>
import math

import jax
import jax.numpy as jnp
from jax import lax
from jax.experimental import pallas as pl
from jax.experimental.pallas import tpu as pltpu

# Tile caps: big enough to amortize per-grid-step overhead and keep the MXU fed,
# small enough (~<=12 MiB double-buffered footprint) for every generation's VMEM.
_TM_CAP = 512     # output rows (sublane axis)
_TN_CAP = 512     # output cols / out-channels
_TK_CAP = 1024    # contraction
_TP_CAP = 512     # pixels (lane axis) in the channel-first path


def _round_up(x: int, m: int) -> int:
    return ((x + m - 1) // m) * m


def _pick_tile(dim: int, unit: int, cap: int):
    """Return (tile, padded_dim): tile is a multiple of `unit`, <= cap, divides
    padded_dim, and padding waste is kept small (<=~12.5%)."""
    dim_u = _round_up(dim, unit)
    if dim_u <= cap:
        return dim_u, dim_u                      # single tile covers everything
    for t in range(cap, unit - 1, -unit):
        pad = _round_up(dim_u, t)
        if pad - dim_u <= max(dim_u // 8, unit):
            return t, pad
    return unit, dim_u                           # unreachable fallback


def _make_matmul_kernel(*, has_bias, k_grid, k_axis, contract_dims, compute_dtype):
    """Kernel computing dot_general(a, b) (+ bias) into the output tile.

    contract_dims: lhs/rhs contracting dims for lax.dot_general.
    k_grid=False  -> single-shot (no accumulator scratch, no pl.when).
    """

    def _mm(a_ref, b_ref):
        a = a_ref[...]
        b = b_ref[...]
        if compute_dtype is not None:
            a = a.astype(compute_dtype)
            b = b.astype(compute_dtype)
        return lax.dot_general(
            a, b, dimension_numbers=(contract_dims, ((), ())),
            preferred_element_type=jnp.float32)

    if not k_grid:
        if has_bias:
            def kernel(a_ref, b_ref, bias_ref, o_ref):
                acc = _mm(a_ref, b_ref) + bias_ref[...].astype(jnp.float32)
                o_ref[...] = acc.astype(o_ref.dtype)
        else:
            def kernel(a_ref, b_ref, o_ref):
                o_ref[...] = _mm(a_ref, b_ref).astype(o_ref.dtype)
        return kernel

    def _body(a_ref, b_ref, bias_ref, o_ref, acc_ref):
        k = pl.program_id(k_axis)

        @pl.when(k == 0)
        def _init():
            acc_ref[...] = jnp.zeros_like(acc_ref)

        acc_ref[...] += _mm(a_ref, b_ref)

        @pl.when(k == pl.num_programs(k_axis) - 1)
        def _finalize():
            acc = acc_ref[...]
            if bias_ref is not None:
                acc = acc + bias_ref[...].astype(jnp.float32)
            o_ref[...] = acc.astype(o_ref.dtype)

    if has_bias:
        def kernel(a_ref, b_ref, bias_ref, o_ref, acc_ref):
            _body(a_ref, b_ref, bias_ref, o_ref, acc_ref)
    else:
        def kernel(a_ref, b_ref, o_ref, acc_ref):
            _body(a_ref, b_ref, None, o_ref, acc_ref)
    return kernel


def _linear_channels_last(x2d, weight, bias, *, compute_dtype, out_dtype):
    """y = x2d @ weight.T + bias.   x2d: (M, K), weight: (N, K)  ->  (M, N)."""
    M, K = x2d.shape
    N, K2 = weight.shape
    assert K == K2, (K, K2)
    has_bias = bias is not None

    m_unit = 16 if compute_dtype == jnp.bfloat16 else 8
    tm, m_pad = _pick_tile(M, m_unit, _TM_CAP)
    tn, n_pad = _pick_tile(N, 128, _TN_CAP)
    if K <= _TK_CAP:
        tk, k_pad = K, K               # full-extent contraction block: no 128 padding
    else:
        tk, k_pad = _pick_tile(K, 128, _TK_CAP)
    k_grid = k_pad != tk

    # v7x megacore: try to expose >=2 parallel blocks when the grid collapses to 1.
    if (m_pad // tm) * (n_pad // tn) == 1:
        if tm > m_unit and (tm // m_unit) % 2 == 0:
            tm //= 2
        elif tn > 128 and (tn // 128) % 2 == 0:
            tn //= 2

    # Zero-pad only where layout requires it (zeros are inert in the matmul).
    if (m_pad, k_pad) != (M, K):
        x2d = jnp.pad(x2d, ((0, m_pad - M), (0, k_pad - K)))
    if (n_pad, k_pad) != (N, K):
        weight = jnp.pad(weight, ((0, n_pad - N), (0, k_pad - K)))

    operands = [x2d, weight]
    grid_m, grid_n = m_pad // tm, n_pad // tn
    if not k_grid:
        grid = (grid_m, grid_n)
        x_spec = pl.BlockSpec((tm, tk), lambda i, j: (i, 0))
        w_spec = pl.BlockSpec((tn, tk), lambda i, j: (j, 0))
        b_spec = pl.BlockSpec((1, tn), lambda i, j: (0, j))
        o_spec = pl.BlockSpec((tm, tn), lambda i, j: (i, j))
        scratch = []
        semantics = ("parallel", "parallel")
        k_axis = None
    else:
        grid = (grid_m, grid_n, k_pad // tk)
        x_spec = pl.BlockSpec((tm, tk), lambda i, j, k: (i, k))
        w_spec = pl.BlockSpec((tn, tk), lambda i, j, k: (j, k))
        b_spec = pl.BlockSpec((1, tn), lambda i, j, k: (0, j))
        o_spec = pl.BlockSpec((tm, tn), lambda i, j, k: (i, j))
        scratch = [pltpu.VMEM((tm, tn), jnp.float32)]
        semantics = ("parallel", "parallel", "arbitrary")
        k_axis = 2

    in_specs = [x_spec, w_spec]
    if has_bias:
        b2 = bias.astype(jnp.float32)
        if n_pad != N:
            b2 = jnp.pad(b2, (0, n_pad - N))
        operands.append(b2.reshape(1, n_pad))
        in_specs.append(b_spec)

    kernel = _make_matmul_kernel(
        has_bias=has_bias, k_grid=k_grid, k_axis=k_axis,
        contract_dims=((1,), (1,)), compute_dtype=compute_dtype)

    x_isz = jnp.dtype(x2d.dtype).itemsize
    w_isz = jnp.dtype(weight.dtype).itemsize
    o_isz = jnp.dtype(out_dtype).itemsize
    footprint = 2 * (tm * tk * x_isz + tn * tk * w_isz + tm * tn * o_isz)
    if k_grid:
        footprint += tm * tn * 4
    if has_bias:
        footprint += 2 * tn * 4
    vmem_limit = int(min(max(footprint * 3 // 2 + (4 << 20), 16 << 20), 48 << 20))

    bytes_accessed = (m_pad * k_pad * x_isz + n_pad * k_pad * w_isz
                      + m_pad * n_pad * o_isz + (n_pad * 4 if has_bias else 0))
    cost = pl.CostEstimate(flops=2 * m_pad * n_pad * k_pad,
                           transcendentals=0, bytes_accessed=bytes_accessed)

    out = pl.pallas_call(
        kernel,
        out_shape=jax.ShapeDtypeStruct((m_pad, n_pad), out_dtype),
        grid=grid,
        in_specs=in_specs,
        out_specs=o_spec,
        scratch_shapes=scratch,
        compiler_params=pltpu.CompilerParams(
            dimension_semantics=semantics, vmem_limit_bytes=vmem_limit),
        cost_estimate=cost,
    )(*operands)

    if (m_pad, n_pad) != (M, N):
        out = out[:M, :N]
    return out


def _conv1x1_channels_first(x, weight, bias, *, compute_dtype, out_dtype):
    """1x1 conv, NCHW in / NCHW out, with no layout transposes.

    y[b, co, p] = sum_ci W[co, ci] * x[b, ci, p] + bias[co],   p in flattened H*W.
    """
    B, C, H, Wd = x.shape
    N, K = weight.shape
    assert C == K, (C, K)
    has_bias = bias is not None
    P = H * Wd
    x3 = x.reshape(B, C, P)

    n_unit = 16 if compute_dtype == jnp.bfloat16 else 8
    tn, n_pad = _pick_tile(N, n_unit, _TN_CAP)
    tp, p_pad = _pick_tile(P, 128, _TP_CAP)
    if K <= _TK_CAP:
        tk, k_pad = K, K
    else:
        tk, k_pad = _pick_tile(K, 128, _TK_CAP)
    k_grid = k_pad != tk

    # v7x megacore heuristic (batch already parallel; only matters for B == 1).
    if B * (n_pad // tn) * (p_pad // tp) == 1:
        if tp > 128 and (tp // 128) % 2 == 0:
            tp //= 2
        elif tn > n_unit and (tn // n_unit) % 2 == 0:
            tn //= 2

    if (k_pad, p_pad) != (K, P):
        x3 = jnp.pad(x3, ((0, 0), (0, k_pad - K), (0, p_pad - P)))
    if (n_pad, k_pad) != (N, K):
        weight = jnp.pad(weight, ((0, n_pad - N), (0, k_pad - K)))

    operands = [weight, x3]
    grid_n, grid_p = n_pad // tn, p_pad // tp
    if not k_grid:
        grid = (B, grid_n, grid_p)
        w_spec = pl.BlockSpec((tn, tk), lambda b, j, p: (j, 0))
        x_spec = pl.BlockSpec((None, tk, tp), lambda b, j, p: (b, 0, p))
        b_spec = pl.BlockSpec((tn, 1), lambda b, j, p: (j, 0))
        o_spec = pl.BlockSpec((None, tn, tp), lambda b, j, p: (b, j, p))
        scratch = []
        semantics = ("parallel", "parallel", "parallel")
        k_axis = None
    else:
        grid = (B, grid_n, grid_p, k_pad // tk)
        w_spec = pl.BlockSpec((tn, tk), lambda b, j, p, k: (j, k))
        x_spec = pl.BlockSpec((None, tk, tp), lambda b, j, p, k: (b, k, p))
        b_spec = pl.BlockSpec((tn, 1), lambda b, j, p, k: (j, 0))
        o_spec = pl.BlockSpec((None, tn, tp), lambda b, j, p, k: (b, j, p))
        scratch = [pltpu.VMEM((tn, tp), jnp.float32)]
        semantics = ("parallel", "parallel", "parallel", "arbitrary")
        k_axis = 3

    in_specs = [w_spec, x_spec]
    if has_bias:
        b2 = bias.astype(jnp.float32)
        if n_pad != N:
            b2 = jnp.pad(b2, (0, n_pad - N))
        operands.append(b2.reshape(n_pad, 1))
        in_specs.append(b_spec)

    kernel = _make_matmul_kernel(
        has_bias=has_bias, k_grid=k_grid, k_axis=k_axis,
        contract_dims=((1,), (0,)), compute_dtype=compute_dtype)

    x_isz = jnp.dtype(x3.dtype).itemsize
    w_isz = jnp.dtype(weight.dtype).itemsize
    o_isz = jnp.dtype(out_dtype).itemsize
    footprint = 2 * (tn * tk * w_isz + tk * tp * x_isz + tn * tp * o_isz)
    if k_grid:
        footprint += tn * tp * 4
    if has_bias:
        footprint += 2 * tn * 4
    vmem_limit = int(min(max(footprint * 3 // 2 + (4 << 20), 16 << 20), 48 << 20))

    bytes_accessed = (B * k_pad * p_pad * x_isz + n_pad * k_pad * w_isz
                      + B * n_pad * p_pad * o_isz + (n_pad * 4 if has_bias else 0))
    cost = pl.CostEstimate(flops=2 * B * n_pad * p_pad * k_pad,
                           transcendentals=0, bytes_accessed=bytes_accessed)

    out = pl.pallas_call(
        kernel,
        out_shape=jax.ShapeDtypeStruct((B, n_pad, p_pad), out_dtype),
        grid=grid,
        in_specs=in_specs,
        out_specs=o_spec,
        scratch_shapes=scratch,
        compiler_params=pltpu.CompilerParams(
            dimension_semantics=semantics, vmem_limit_bytes=vmem_limit),
        cost_estimate=cost,
    )(*operands)

    if (n_pad, p_pad) != (N, P):
        out = out[:, :N, :P]
    return out.reshape(B, N, H, Wd)


def linear_layer_forward(x, weight, bias=None, channel_first=False,
                         compute_dtype=jnp.bfloat16):
    """JAX/Pallas equivalent of LinearLayer.forward.

    weight: (out_features, in_features), bias: (out_features,) or None.
    compute_dtype=jnp.bfloat16 quantizes MXU operands (f32 accumulation); pass
    None for full-f32 operand semantics.
    """
    out_features, in_features = weight.shape

    if channel_first:
        assert x.ndim == 4 and x.shape[1] == in_features, (x.shape, in_features)
        return _conv1x1_channels_first(
            x, weight, bias, compute_dtype=compute_dtype, out_dtype=x.dtype)
    else:
        lead = x.shape[:-1]
        assert x.shape[-1] == in_features, (x.shape[-1], in_features)
        x2d = x.reshape(-1, in_features)
        y2d = _linear_channels_last(
            x2d, weight, bias, compute_dtype=compute_dtype, out_dtype=x.dtype)
        return y2d.reshape(*lead, out_features)


if __name__ == "__main__":
    key = jax.random.PRNGKey(0)
    k1, k2, k3, k4, k5, k6, k7, k8, k9 = jax.random.split(key, 9)

    # ---- channel_first=False (F.linear path), with bias --------------------
    in_f, out_f = 256, 128
    x = jax.random.normal(k1, (2, 8, in_f), jnp.float32)
    limit = math.sqrt(6.0 / (in_f + out_f))              # xavier_uniform
    w = jax.random.uniform(k2, (out_f, in_f), jnp.float32, -limit, limit)
    b = 0.1 * jax.random.normal(k3, (out_f,), jnp.float32)

    y = linear_layer_forward(x, w, b, channel_first=False)
    jax.block_until_ready(y)
    assert y.shape == (2, 8, out_f)
    ref = jnp.dot(x.reshape(-1, in_f).astype(jnp.bfloat16),
                  w.astype(jnp.bfloat16).T,
                  preferred_element_type=jnp.float32).reshape(2, 8, out_f) + b
    assert jnp.allclose(y, ref, atol=2e-3, rtol=2e-3), float(jnp.max(jnp.abs(y - ref)))

    # ---- channel_first=False, no bias (exercises the bias-less kernel) -----
    y_nb = linear_layer_forward(x, w, None, channel_first=False)
    jax.block_until_ready(y_nb)
    ref_nb = ref - b
    assert jnp.allclose(y_nb, ref_nb, atol=2e-3, rtol=2e-3), \
        float(jnp.max(jnp.abs(y_nb - ref_nb)))

    # ---- channel_first=True (1x1-conv path, NCHW kept end-to-end) ----------
    in_f2, out_f2 = 32, 64
    x2 = jax.random.normal(k4, (2, in_f2, 8, 8), jnp.float32)
    lim2 = math.sqrt(6.0 / (in_f2 + out_f2))
    w2 = jax.random.uniform(k5, (out_f2, in_f2), jnp.float32, -lim2, lim2)
    b2 = 0.1 * jax.random.normal(k6, (out_f2,), jnp.float32)

    y2 = linear_layer_forward(x2, w2, b2, channel_first=True)
    jax.block_until_ready(y2)
    assert y2.shape == (2, out_f2, 8, 8)
    ref2 = jnp.einsum("nchw,oc->nohw",
                      x2.astype(jnp.bfloat16), w2.astype(jnp.bfloat16),
                      preferred_element_type=jnp.float32) + b2[None, :, None, None]
    assert jnp.allclose(y2, ref2, atol=2e-3, rtol=2e-3), \
        float(jnp.max(jnp.abs(y2 - ref2)))

    # ---- large-K case (exercises the K-tiled accumulator kernel) -----------
    in_f3, out_f3 = 2048, 128
    x3 = jax.random.normal(k7, (4, in_f3), jnp.float32)
    lim3 = math.sqrt(6.0 / (in_f3 + out_f3))
    w3 = jax.random.uniform(k8, (out_f3, in_f3), jnp.float32, -lim3, lim3)
    b3 = 0.1 * jax.random.normal(k9, (out_f3,), jnp.float32)

    y3 = linear_layer_forward(x3, w3, b3, channel_first=False)
    jax.block_until_ready(y3)
    ref3 = jnp.dot(x3.astype(jnp.bfloat16), w3.astype(jnp.bfloat16).T,
                   preferred_element_type=jnp.float32) + b3
    assert jnp.allclose(y3, ref3, atol=1e-2, rtol=1e-2), \
        float(jnp.max(jnp.abs(y3 - ref3)))

    print("KERNEL_OK")
</pallas_src>

<mosaic_0001>
module attributes {stable_mosaic.version = 11 : i64} {
  func.func @kernel(%arg0: i32, %arg1: i32, %arg2: memref<16x256xf32, #tpu.memory_space<vmem>>, %arg3: memref<128x256xf32, #tpu.memory_space<vmem>>, %arg4: memref<1x128xf32, #tpu.memory_space<vmem>>, %arg5: memref<16x128xf32, #tpu.memory_space<vmem>>) attributes {dimension_semantics = [#tpu.dimension_semantics<parallel>, #tpu.dimension_semantics<parallel>], iteration_bounds = array<i64: 1, 1>, scalar_prefetch = 0 : i64, scratch_operands = 0 : i64, tpu.core_type = #tpu.core_type<tc>, window_params = [{transform_indices = @transform_0, window_bounds = array<i64: 16, 256>}, {transform_indices = @transform_1, window_bounds = array<i64: 128, 256>}, {transform_indices = @transform_2, window_bounds = array<i64: 1, 128>}, {transform_indices = @transform_3, window_bounds = array<i64: 16, 128>}]} {
    %c0 = arith.constant 0 : index
    %c0_0 = arith.constant 0 : index
    %0 = vector.load %arg2[%c0, %c0_0] : memref<16x256xf32, #tpu.memory_space<vmem>>, vector<16x256xf32>
    %c0_1 = arith.constant 0 : index
    %c0_2 = arith.constant 0 : index
    %1 = vector.load %arg3[%c0_1, %c0_2] : memref<128x256xf32, #tpu.memory_space<vmem>>, vector<128x256xf32>
    %2 = arith.truncf %0 : vector<16x256xf32> to vector<16x256xbf16>
    %3 = arith.truncf %1 : vector<128x256xf32> to vector<128x256xbf16>
    %cst = arith.constant dense<0.000000e+00> : vector<16x128xf32>
    %4 = tpu.matmul %2, %3, %cst {dimension_numbers = #tpu.dot_dimension_numbers<[1], [1], [0], [0], [0, 0, 1, 0], [], []>} : vector<16x256xbf16>, vector<128x256xbf16>, vector<16x128xf32> -> vector<16x128xf32>
    %c0_3 = arith.constant 0 : index
    %c0_4 = arith.constant 0 : index
    %5 = vector.load %arg4[%c0_3, %c0_4] : memref<1x128xf32, #tpu.memory_space<vmem>>, vector<1x128xf32>
    %6 = vector.broadcast %5 : vector<1x128xf32> to vector<16x128xf32>
    %7 = arith.addf %4, %6 : vector<16x128xf32>
    %c0_5 = arith.constant 0 : index
    %c0_6 = arith.constant 0 : index
    %8 = vector.load %arg5[%c0_5, %c0_6] : memref<16x128xf32, #tpu.memory_space<vmem>>, vector<16x128xf32>
    tpu.vector_store %arg5[%c0_5, %c0_6], %7 {strides = array<i32>} : memref<16x128xf32, #tpu.memory_space<vmem>>, vector<16x128xf32>,
    return
  }
  func.func @transform_0(%arg0: i32, %arg1: i32) -> (i32, i32) {
    %c0_i32 = arith.constant 0 : i32
    %c0_i32_0 = arith.constant 0 : i32
    return %arg0, %c0_i32 : i32, i32
  }
  func.func @transform_1(%arg0: i32, %arg1: i32) -> (i32, i32) {
    %c0_i32 = arith.constant 0 : i32
    %c0_i32_0 = arith.constant 0 : i32
    return %arg1, %c0_i32 : i32, i32
  }
  func.func @transform_2(%arg0: i32, %arg1: i32) -> (i32, i32) {
    %c0_i32 = arith.constant 0 : i32
    %c0_i32_0 = arith.constant 0 : i32
    return %c0_i32, %arg1 : i32, i32
  }
  func.func @transform_3(%arg0: i32, %arg1: i32) -> (i32, i32) {
    %c0_i32 = arith.constant 0 : i32
    return %arg0, %arg1 : i32, i32
  }
}

</mosaic_0001>

<llo_original>
// kernel: tpu_custom_call.1
$region0: #{tpu_custom_call.1}
  #allocation0 [shape = 'u32[]', space=smem, size = 0x4, offset = 0x4, fixed_abs, tag = 'smem constant byte address 0x4 - core index']
  #allocation1 [shape = 'u32[144,128]{1,0:T(1,128)}', space=vmem, size = 0x12000, scoped, tag = 'internal scratch']
  %s0 = inlined_call_operand.hbm [shape: f32[16,256], index: 0, kind: input, shape index: {}]
  %s1 = inlined_call_operand.hbm [shape: f32[128,256], index: 1, kind: input, shape index: {}]
  %s2 = inlined_call_operand.vmem [shape: f32[1,128], index: 2, kind: input, shape index: {}]
  %s3 = inlined_call_operand.hbm [shape: f32[16,128], index: 3, kind: output, shape index: {}]
  %s4 = sld [smem:[#allocation0]]
  $region30: #{tpu_custom_call.1} parent=0
    _
  %s6 = ssub.s32 1, %s4
  %s7 = scalar_select 0, %s6, %s4
  $region1: #{tpu_custom_call.1} parent=0
    #allocation2 [shape = 'u8[16384]{0}', space=vmem, size = 0x4000, scoped, tag = 'input window, operand 0, single buffered']
    #allocation3 [shape = 's32[1]{0}', space=sflag, size = 0x4, scoped, tag = 'scoped memory for tpu_custom_call.1']
    #allocation4 [shape = 's32[1]{0}', space=sflag, size = 0x4, scoped, tag = 'scoped memory for tpu_custom_call.1']
    #allocation5 [shape = 'u8[131072]{0}', space=vmem, size = 0x20000, scoped, tag = 'input window, operand 1, single buffered']
    #allocation6 [shape = 's32[1]{0}', space=sflag, size = 0x4, scoped, tag = 'scoped memory for tpu_custom_call.1']
    #allocation7 [shape = 'u8[8192]{0}', space=vmem, size = 0x2000, scoped, tag = 'output window, operand 0, single buffered']
    %8 = vsyncpa [#allocation3], 0
    %9 = vsyncpa [#allocation6], 0
    %10 = vsyncpa [#allocation4], 0
    // Predicated region
    $region2: #{tpu_custom_call.1} parent=1 // pred_check
      _
    $region3: #{tpu_custom_call.1} parent=1 // pred_check_branch
      %12 = sbr.rel (0) target = $region5
    $region4: #{tpu_custom_call.1} parent=1 // pred_region
      %s14 = ssub.s32 512, 512
      %15 = vsyncadd [#allocation3], %s14
      %s16 = sshll.u32 [#allocation2], 4
      %s17 = int_to_ptr.vmem [resolvable:$true] %s16
      %22 = dma.hbm_to_vmem [thread:$0]  %s0, 512, %s17, [#allocation3], 256, 256, 16
    $region5: #{tpu_custom_call.1} parent=1 // pred_fallthru
      _
    // Predicated region
    $region6: #{tpu_custom_call.1} parent=1 // pred_check
      _
    $region7: #{tpu_custom_call.1} parent=1 // pred_check_branch
      %24 = sbr.rel (0) target = $region9
    $region8: #{tpu_custom_call.1} parent=1 // pred_region
      %s26 = ssub.s32 4096, 4096
      %27 = vsyncadd [#allocation6], %s26
      %s28 = sshll.u32 [#allocation5], 4
      %s29 = int_to_ptr.vmem [resolvable:$true] %s28
      %34 = dma.hbm_to_vmem [thread:$0]  %s1, 4096, %s29, [#allocation6], 256, 256, 16
    $region9: #{tpu_custom_call.1} parent=1 // pred_fallthru
      _
    // Predicated region
    $region10: #{tpu_custom_call.1} parent=1 // pred_check
      _
    $region11: #{tpu_custom_call.1} parent=1 // pred_check_branch
      %36 = sbr.rel (0) target = $region13
    $region12: #{tpu_custom_call.1} parent=1 // pred_region
      _
    $region13: #{tpu_custom_call.1} parent=1 // pred_fallthru
      _
    // Predicated region
    $region14: #{tpu_custom_call.1} parent=1 // pred_check
      _
    $region15: #{tpu_custom_call.1} parent=1 // pred_check_branch
      %38 = sbr.rel (0) target = $region17
    $region16: #{tpu_custom_call.1} parent=1 // pred_region
      %39 = dma.done [#allocation3], 512
    $region17: #{tpu_custom_call.1} parent=1 // pred_fallthru
      _
    // Predicated region
    $region18: #{tpu_custom_call.1} parent=1 // pred_check
      _
    $region19: #{tpu_custom_call.1} parent=1 // pred_check_branch
      %41 = sbr.rel (0) target = $region21
    $region20: #{tpu_custom_call.1} parent=1 // pred_region
      %42 = dma.done [#allocation6], 4096
    $region21: #{tpu_custom_call.1} parent=1 // pred_fallthru
      _
    %v44 = vld [vmem:[#allocation2] sm:$0xff]
    %v45 = vld [vmem:[#allocation2 + $0x8] sm:$0xff]
    %v46 = vld [vmem:[#allocation2 + $0x10] sm:$0xff]
    %v47 = vld [vmem:[#allocation2 + $0x18] sm:$0xff]
    %v48 = vld [vmem:[#allocation5] sm:$0xff]
    %v49 = vld [vmem:[#allocation5 + $0x8] sm:$0xff]
    %v50 = vld [vmem:[#allocation5 + $0x10] sm:$0xff]
    %v51 = vld [vmem:[#allocation5 + $0x18] sm:$0xff]
    %v52 = vld [vmem:[#allocation5 + $0x20] sm:$0xff]
    %v53 = vld [vmem:[#allocation5 + $0x28] sm:$0xff]
    %v54 = vld [vmem:[#allocation5 + $0x30] sm:$0xff]
    %v55 = vld [vmem:[#allocation5 + $0x38] sm:$0xff]
    %v56 = vld [vmem:[#allocation5 + $0x40] sm:$0xff]
    %v57 = vld [vmem:[#allocation5 + $0x48] sm:$0xff]
    %v58 = vld [vmem:[#allocation5 + $0x50] sm:$0xff]
    %v59 = vld [vmem:[#allocation5 + $0x58] sm:$0xff]
    %v60 = vld [vmem:[#allocation5 + $0x60] sm:$0xff]
    %v61 = vld [vmem:[#allocation5 + $0x68] sm:$0xff]
    %v62 = vld [vmem:[#allocation5 + $0x70] sm:$0xff]
    %v63 = vld [vmem:[#allocation5 + $0x78] sm:$0xff]
    %v64 = vld [vmem:[#allocation5 + $0x80] sm:$0xff]
    %v65 = vld [vmem:[#allocation5 + $0x88] sm:$0xff]
    %v66 = vld [vmem:[#allocation5 + $0x90] sm:$0xff]
    %v67 = vld [vmem:[#allocation5 + $0x98] sm:$0xff]
    %v68 = vld [vmem:[#allocation5 + $0xa0] sm:$0xff]
    %v69 = vld [vmem:[#allocation5 + $0xa8] sm:$0xff]
    %v70 = vld [vmem:[#allocation5 + $0xb0] sm:$0xff]
    %v71 = vld [vmem:[#allocation5 + $0xb8] sm:$0xff]
    %v72 = vld [vmem:[#allocation5 + $0xc0] sm:$0xff]
    %v73 = vld [vmem:[#allocation5 + $0xc8] sm:$0xff]
    %v74 = vld [vmem:[#allocation5 + $0xd0] sm:$0xff]
    %v75 = vld [vmem:[#allocation5 + $0xd8] sm:$0xff]
    %v76 = vld [vmem:[#allocation5 + $0xe0] sm:$0xff]
    %v77 = vld [vmem:[#allocation5 + $0xe8] sm:$0xff]
    %v78 = vld [vmem:[#allocation5 + $0xf0] sm:$0xff]
    %v79 = vld [vmem:[#allocation5 + $0xf8] sm:$0xff]
    %v80 = vpack.c.bf16 %v46, %v44
    %v81 = vpack.c.bf16 %v47, %v45
    %v82 = vpack.c.bf16 %v50, %v48
    %v83 = vpack.c.bf16 %v51, %v49
    %v84 = vpack.c.bf16 %v54, %v52
    %v85 = vpack.c.bf16 %v55, %v53
    %v86 = vpack.c.bf16 %v58, %v56
    %v87 = vpack.c.bf16 %v59, %v57
    %v88 = vpack.c.bf16 %v62, %v60
    %v89 = vpack.c.bf16 %v63, %v61
    %v90 = vpack.c.bf16 %v66, %v64
    %v91 = vpack.c.bf16 %v67, %v65
    %v92 = vpack.c.bf16 %v70, %v68
    %v93 = vpack.c.bf16 %v71, %v69
    %v94 = vpack.c.bf16 %v74, %v72
    %v95 = vpack.c.bf16 %v75, %v73
    %v96 = vpack.c.bf16 %v78, %v76
    %v97 = vpack.c.bf16 %v79, %v77
    %v98 = vld [vmem:[%s2] sm:$0x1]
    %v100 = vlaneseq
    %v101 = vshrl.u32 %v100, 7
    %v102 = vsub.s32 0, %v101
    %v103 = vrot.slane %v98, %v102
    %105 = vmatprep.subr.bf16.mxu0 %v83
    %106 = vmatpush1.bf16.xpose.msra.mxu0 %v82
    %107 = vmatprep.subr.bf16.mxu0 %v85
    %108 = vmatpush1.bf16.xpose.msra.mxu0 %v84
    %109 = vmatprep.subr.bf16.mxu0 %v87
    %110 = vmatpush1.bf16.xpose.msra.mxu0 %v86
    %111 = vmatprep.subr.bf16.mxu0 %v89
    %112 = vmatpush1.bf16.xpose.msra.mxu0 %v88
    %113 = vmatprep.subr.bf16.mxu0 %v91
    %114 = vmatpush1.bf16.xpose.msra.mxu0 %v90
    %115 = vmatprep.subr.bf16.mxu0 %v93
    %116 = vmatpush1.bf16.xpose.msra.mxu0 %v92
    %117 = vmatprep.subr.bf16.mxu0 %v95
    %118 = vmatpush1.bf16.xpose.msra.mxu0 %v94
    %119 = vmatprep.subr.bf16.mxu0 %v97
    %120 = vmatpush1.bf16.xpose.msra.mxu0 %v96
    %121 = vmatprep.subr.bf16.mxu0 0
    %122 = vmatpush1.bf16.xpose.msra.mxu0 0
    %123 = vmatprep.subr.bf16.mxu0 0
    %124 = vmatpush1.bf16.xpose.msra.mxu0 0
    %125 = vmatprep.subr.bf16.mxu0 0
    %126 = vmatpush1.bf16.xpose.msra.mxu0 0
    %127 = vmatprep.subr.bf16.mxu0 0
    %128 = vmatpush1.bf16.xpose.msra.mxu0 0
    %129 = vmatprep.subr.bf16.mxu0 0
    %130 = vmatpush1.bf16.xpose.msra.mxu0 0
    %131 = vmatprep.subr.bf16.mxu0 0
    %132 = vmatpush1.bf16.xpose.msra.mxu0 0
    %133 = vmatprep.subr.bf16.mxu0 0
    %134 = vmatpush1.bf16.xpose.msra.mxu0 0
    %135 = vmatprep.subr.bf16.mxu0 0
    %136 = vmatpush1.bf16.xpose.msra.mxu0 0
    %137 = vmatprep.mubr.bf16.mxu0 %v81
    %138 = vmatmul.mubr.bf16.gmra.mrb[0].mxu0 %v80
    %v139 = vpop.f32.mrb[0].mxu0
    %v140 = vadd.f32 %v103, %v139
    %v141 = vpop.f32.mrb[0].mxu0
    %v142 = vpop.f32.mrb[0].mxu0
    %v143 = vadd.f32 %v103, %v142
    %v144 = vpop.f32.mrb[0].mxu0
    %145 = vdwg.mxu0
    %146 = vst [vmem:[#allocation7] sm:$0xff] %v140
    %147 = vst [vmem:[#allocation7 + $0x8] sm:$0xff] %v143
    // Predicated region
    $region22: #{tpu_custom_call.1} parent=1 // pred_check
      _
    $region23: #{tpu_custom_call.1} parent=1 // pred_check_branch
      %149 = sbr.rel (0) target = $region25
    $region24: #{tpu_custom_call.1} parent=1 // pred_region
      %s151 = ssub.s32 256, 256
      %152 = vsyncadd [#allocation4], %s151
      %s153 = sshll.u32 [#allocation7], 4
      %s154 = int_to_ptr.vmem [resolvable:$true] %s153
      %159 = dma.vmem_to_hbm [thread:$0]  %s154, 256, %s3, [#allocation4], 128, 128, 8
    $region25: #{tpu_custom_call.1} parent=1 // pred_fallthru
      _
    // Predicated region
    $region26: #{tpu_custom_call.1} parent=1 // pred_check
      _
    $region27: #{tpu_custom_call.1} parent=1 // pred_check_branch
      %161 = sbr.rel (0) target = $region29
    $region28: #{tpu_custom_call.1} parent=1 // pred_region
      %162 = dma.done [#allocation4], 256
    $region29: #{tpu_custom_call.1} parent=1 // pred_fallthru
      _
    %163 = vsyncpa [#allocation3], 1
    %164 = vsyncpa [#allocation6], 1
    %165 = vsyncpa [#allocation4], 1

</llo_original>
